<compile_context>
chip_gen: v6e
topology: v6e:2x2x1
jax: 0.10.0
libtpu: 0.0.40
codegen_flags: <defaults>
</compile_context>

<pallas_src>
from functools import partial

import jax
import jax.numpy as jnp
from jax.experimental import pallas as pl
from jax.experimental.pallas import tpu as pltpu


def _pos_embed_kernel(emb_ref, out_ref, *, x_len):
    # emb_ref : (L_blk, F) first rows of the embedding table (constant block,
    #           DMA'd into VMEM once since its block index never changes)
    # out_ref : (TB, F, L) chunk of the batch dimension
    emb = emb_ref[:x_len, :]                    # (L, F) static slice
    emb_t = jnp.transpose(emb, (1, 0))          # (F, L) — XLU, hidden under stores
    out_ref[...] = jnp.broadcast_to(emb_t[None, :, :], out_ref.shape)


def _choose_batch_tile(B, F, L, itemsize, vmem_out_budget=24 << 20):
    """Pick the batch tile TB.

    The kernel is purely HBM-writeback bound, so TB is made as large as the
    (double-buffered) output-block VMEM budget allows.  If B fits in one block,
    use a single grid step (no forced split — megacore sharding only helps on
    v7x and a 2-step split of a tiny B just adds per-step overhead on
    single-TC v5e/v6e).  If several steps are needed, prefer a TB that divides
    B so the last block's writeback is unmasked and steps balance across
    v7x's two TensorCores.
    """
    per_batch = F * L * itemsize
    tb_max = int(max(1, min(B, vmem_out_budget // (2 * per_batch))))
    if tb_max >= B:
        return int(B)
    # Largest divisor of B not exceeding tb_max, unless that would shrink the
    # DMA chunk by more than 2x (then keep the big chunk and accept a masked
    # tail block).
    for tb in range(tb_max, 0, -1):
        if B % tb == 0:
            if 2 * tb >= tb_max:
                return tb
            break
    return tb_max


def position_embedding_learned(x, embed_weight, mask=None):
    """x: (B, ..., L) array (only B and L are used, matching the PyTorch module).
    embed_weight: (num_pos_dict, num_pos_feats) learned embedding table.
    mask: unused (kept for signature parity with the PyTorch forward).
    Returns pos: (B, num_pos_feats, L)."""
    del mask
    B = x.shape[0]
    L = x.shape[-1]
    N, F = embed_weight.shape
    assert L <= N, "x_len must be <= num_pos_dict"

    # Row block covering the first L rows of the table, rounded up to a
    # sublane multiple (8) so the BlockSpec satisfies the (8,128) rule
    # (the lane dim F is the full array dim, so it is always legal).
    L_blk = ((L + 7) // 8) * 8
    if L_blk > N:
        L_blk = N

    itemsize = jnp.dtype(embed_weight.dtype).itemsize
    tb = _choose_batch_tile(B, F, L, itemsize)
    grid = (pl.cdiv(B, tb),)

    kernel = partial(_pos_embed_kernel, x_len=L)

    return pl.pallas_call(
        kernel,
        out_shape=jax.ShapeDtypeStruct((B, F, L), embed_weight.dtype),
        grid_spec=pltpu.PrefetchScalarGridSpec(
            num_scalar_prefetch=0,
            grid=grid,
            # Constant block index across the grid -> the table slice is
            # DMA'd HBM->VMEM only once.
            in_specs=[pl.BlockSpec((L_blk, F), lambda b: (0, 0))],
            # Large lane-dense output slabs over the batch axis.
            out_specs=pl.BlockSpec((tb, F, L), lambda b: (b, 0, 0)),
        ),
        compiler_params=pltpu.CompilerParams(
            # Batch steps are fully independent; lets v7x shard them across
            # its 2 TensorCores. No cross-step scratch state, so this is safe.
            dimension_semantics=("parallel",),
            # Above v5e/v6e scoped defaults (16/32 MiB), within v7x's 64 MiB
            # physical VMEM; actual usage is ~2*12 MiB output + tiny input.
            vmem_limit_bytes=48 << 20,
        ),
    )(embed_weight)


if __name__ == "__main__":
    # Small, module-consistent shapes.  L and num_pos_feats chosen as 128 so
    # the output's last dim fills the 128-lane axis (unmasked lane-dense
    # stores on the write path).
    num_pos_dict = 256
    num_pos_feats = 128
    B, C, L = 4, 4, 128

    key = jax.random.PRNGKey(0)
    k_w, k_x = jax.random.split(key)

    # reset_parameters(): nn.init.uniform_(weight) -> U[0, 1)
    embed_weight = jax.random.uniform(
        k_w, (num_pos_dict, num_pos_feats), dtype=jnp.float32
    )
    x = jax.random.normal(k_x, (B, C, L), dtype=jnp.float32)
    mask = None  # unused by the PyTorch forward

    pos = position_embedding_learned(x, embed_weight, mask)
    pos = jax.block_until_ready(pos)

    # Reference check (pure JAX) of the forward semantics.
    ref = jnp.broadcast_to(
        jnp.transpose(embed_weight[:L, :], (1, 0))[None, :, :],
        (B, num_pos_feats, L),
    )
    assert pos.shape == (B, num_pos_feats, L)
    assert jnp.allclose(pos, ref)

    print("KERNEL_OK")
</pallas_src>

<mosaic_0001>
module attributes {stable_mosaic.version = 11 : i64} {
  func.func @_pos_embed_kernel(%arg0: i32, %arg1: memref<128x128xf32, #tpu.memory_space<vmem>>, %arg2: memref<4x128x128xf32, #tpu.memory_space<vmem>>) attributes {dimension_semantics = [#tpu.dimension_semantics<parallel>], iteration_bounds = array<i64: 1>, scalar_prefetch = 0 : i64, scratch_operands = 0 : i64, tpu.core_type = #tpu.core_type<tc>, window_params = [{transform_indices = @transform_0, window_bounds = array<i64: 128, 128>}, {transform_indices = @transform_1, window_bounds = array<i64: 4, 128, 128>}]} {
    %c0 = arith.constant 0 : index
    %c0_0 = arith.constant 0 : index
    %0 = vector.load %arg1[%c0, %c0_0] : memref<128x128xf32, #tpu.memory_space<vmem>>, vector<128x128xf32>
    %1 = tpu.transpose %0, [1, 0] : vector<128x128xf32> -> vector<128x128xf32>
    %2 = vector.shape_cast %1 : vector<128x128xf32> to vector<1x128x128xf32>
    %3 = vector.shape_cast %2 : vector<1x128x128xf32> to vector<1x128x128xf32>
    %4 = vector.broadcast %3 : vector<1x128x128xf32> to vector<4x128x128xf32>
    %c0_1 = arith.constant 0 : index
    %c0_2 = arith.constant 0 : index
    %c0_3 = arith.constant 0 : index
    %5 = vector.load %arg2[%c0_1, %c0_2, %c0_3] : memref<4x128x128xf32, #tpu.memory_space<vmem>>, vector<4x128x128xf32>
    tpu.vector_store %arg2[%c0_1, %c0_2, %c0_3], %4 {strides = array<i32>} : memref<4x128x128xf32, #tpu.memory_space<vmem>>, vector<4x128x128xf32>,
    return
  }
  func.func @transform_0(%arg0: i32) -> (i32, i32) {
    %c0_i32 = arith.constant 0 : i32
    %c0_i32_0 = arith.constant 0 : i32
    %c0_i32_1 = arith.constant 0 : i32
    return %c0_i32, %c0_i32_0 : i32, i32
  }
  func.func @transform_1(%arg0: i32) -> (i32, i32, i32) {
    %c0_i32 = arith.constant 0 : i32
    %c0_i32_0 = arith.constant 0 : i32
    %c0_i32_1 = arith.constant 0 : i32
    return %arg0, %c0_i32, %c0_i32_0 : i32, i32, i32
  }
}

</mosaic_0001>

<llo_original>
// kernel: tpu_custom_call.1
$region0: #{tpu_custom_call.1}
  #allocation0 [shape = 'u32[]', space=smem, size = 0x4, offset = 0x4, fixed_abs, tag = 'smem constant byte address 0x4 - core index']
  #allocation1 [shape = 'u32[144,128]{1,0:T(1,128)}', space=vmem, size = 0x12000, scoped, tag = 'internal scratch']
  %s0 = inlined_call_operand.hbm [shape: f32[256,128], index: 0, kind: input, shape index: {}]
  %s1 = inlined_call_operand.hbm [shape: f32[4,128,128], index: 1, kind: output, shape index: {}]
  %s2 = sld [smem:[#allocation0]]
  $region18: #{tpu_custom_call.1} parent=0
    _
  %s4 = ssub.s32 1, %s2
  %s5 = scalar_select 0, %s4, %s2
  $region1: #{tpu_custom_call.1} parent=0
    #allocation2 [shape = 'u8[65536]{0}', space=vmem, size = 0x10000, scoped, tag = 'input window, operand 0, single buffered']
    #allocation3 [shape = 's32[1]{0}', space=sflag, size = 0x4, scoped, tag = 'scoped memory for tpu_custom_call.1']
    #allocation4 [shape = 's32[1]{0}', space=sflag, size = 0x4, scoped, tag = 'scoped memory for tpu_custom_call.1']
    #allocation5 [shape = 'u8[262144]{0}', space=vmem, size = 0x40000, scoped, tag = 'output window, operand 0, single buffered']
    %6 = vsyncpa [#allocation3], 0
    %7 = vsyncpa [#allocation4], 0
    // Predicated region
    $region2: #{tpu_custom_call.1} parent=1 // pred_check
      _
    $region3: #{tpu_custom_call.1} parent=1 // pred_check_branch
      %9 = sbr.rel (0) target = $region5
    $region4: #{tpu_custom_call.1} parent=1 // pred_region
      %s11 = ssub.s32 2048, 2048
      %12 = vsyncadd [#allocation3], %s11
      %s13 = sshll.u32 [#allocation2], 4
      %s14 = int_to_ptr.vmem [resolvable:$true] %s13
      %19 = dma.hbm_to_vmem [thread:$0]  %s0, 2048, %s14, [#allocation3], 128, 128, 8
    $region5: #{tpu_custom_call.1} parent=1 // pred_fallthru
      _
    // Predicated region
    $region6: #{tpu_custom_call.1} parent=1 // pred_check
      _
    $region7: #{tpu_custom_call.1} parent=1 // pred_check_branch
      %21 = sbr.rel (0) target = $region9
    $region8: #{tpu_custom_call.1} parent=1 // pred_region
      %22 = dma.done [#allocation3], 2048
    $region9: #{tpu_custom_call.1} parent=1 // pred_fallthru
      _
    %v23 = vld [vmem:[#allocation2] sm:$0xff]
    %v24 = vld [vmem:[#allocation2 + $0x8] sm:$0xff]
    %v25 = vld [vmem:[#allocation2 + $0x10] sm:$0xff]
    %v26 = vld [vmem:[#allocation2 + $0x18] sm:$0xff]
    %v27 = vld [vmem:[#allocation2 + $0x20] sm:$0xff]
    %v28 = vld [vmem:[#allocation2 + $0x28] sm:$0xff]
    %v29 = vld [vmem:[#allocation2 + $0x30] sm:$0xff]
    %v30 = vld [vmem:[#allocation2 + $0x38] sm:$0xff]
    %v31 = vld [vmem:[#allocation2 + $0x40] sm:$0xff]
    %v32 = vld [vmem:[#allocation2 + $0x48] sm:$0xff]
    %v33 = vld [vmem:[#allocation2 + $0x50] sm:$0xff]
    %v34 = vld [vmem:[#allocation2 + $0x58] sm:$0xff]
    %v35 = vld [vmem:[#allocation2 + $0x60] sm:$0xff]
    %v36 = vld [vmem:[#allocation2 + $0x68] sm:$0xff]
    %v37 = vld [vmem:[#allocation2 + $0x70] sm:$0xff]
    %v38 = vld [vmem:[#allocation2 + $0x78] sm:$0xff]
    %39 = vxpose.xlu0.b32.start [1/16] %v23, 128
    %40 = vxpose.xlu0.b32.cont [2/16] %v24, 128
    %41 = vxpose.xlu0.b32.cont [3/16] %v25, 128
    %42 = vxpose.xlu0.b32.cont [4/16] %v26, 128
    %43 = vxpose.xlu0.b32.cont [5/16] %v27, 128
    %44 = vxpose.xlu0.b32.cont [6/16] %v28, 128
    %45 = vxpose.xlu0.b32.cont [7/16] %v29, 128
    %46 = vxpose.xlu0.b32.cont [8/16] %v30, 128
    %47 = vxpose.xlu0.b32.cont [9/16] %v31, 128
    %48 = vxpose.xlu0.b32.cont [10/16] %v32, 128
    %49 = vxpose.xlu0.b32.cont [11/16] %v33, 128
    %50 = vxpose.xlu0.b32.cont [12/16] %v34, 128
    %51 = vxpose.xlu0.b32.cont [13/16] %v35, 128
    %52 = vxpose.xlu0.b32.cont [14/16] %v36, 128
    %53 = vxpose.xlu0.b32.cont [15/16] %v37, 128
    %54 = vxpose.xlu0.b32.end [16/16] %v38, 128
    %v55 = vpop.trf.xlu0
    %v56 = vpop.trf.xlu0
    %v57 = vpop.trf.xlu0
    %v58 = vpop.trf.xlu0
    %v59 = vpop.trf.xlu0
    %v60 = vpop.trf.xlu0
    %v61 = vpop.trf.xlu0
    %v62 = vpop.trf.xlu0
    %v63 = vpop.trf.xlu0
    %v64 = vpop.trf.xlu0
    %v65 = vpop.trf.xlu0
    %v66 = vpop.trf.xlu0
    %v67 = vpop.trf.xlu0
    %v68 = vpop.trf.xlu0
    %v69 = vpop.trf.xlu0
    %v70 = vpop.trf.xlu0
    %71 = vst [vmem:[#allocation5] sm:$0xff] %v55
    %72 = vst [vmem:[#allocation5 + $0x8] sm:$0xff] %v56
    %73 = vst [vmem:[#allocation5 + $0x10] sm:$0xff] %v57
    %74 = vst [vmem:[#allocation5 + $0x18] sm:$0xff] %v58
    %75 = vst [vmem:[#allocation5 + $0x20] sm:$0xff] %v59
    %76 = vst [vmem:[#allocation5 + $0x28] sm:$0xff] %v60
    %77 = vst [vmem:[#allocation5 + $0x30] sm:$0xff] %v61
    %78 = vst [vmem:[#allocation5 + $0x38] sm:$0xff] %v62
    %79 = vst [vmem:[#allocation5 + $0x40] sm:$0xff] %v63
    %80 = vst [vmem:[#allocation5 + $0x48] sm:$0xff] %v64
    %81 = vst [vmem:[#allocation5 + $0x50] sm:$0xff] %v65
    %82 = vst [vmem:[#allocation5 + $0x58] sm:$0xff] %v66
    %83 = vst [vmem:[#allocation5 + $0x60] sm:$0xff] %v67
    %84 = vst [vmem:[#allocation5 + $0x68] sm:$0xff] %v68
    %85 = vst [vmem:[#allocation5 + $0x70] sm:$0xff] %v69
    %86 = vst [vmem:[#allocation5 + $0x78] sm:$0xff] %v70
    %87 = vst [vmem:[#allocation5 + $0x80] sm:$0xff] %v55
    %88 = vst [vmem:[#allocation5 + $0x88] sm:$0xff] %v56
    %89 = vst [vmem:[#allocation5 + $0x90] sm:$0xff] %v57
    %90 = vst [vmem:[#allocation5 + $0x98] sm:$0xff] %v58
    %91 = vst [vmem:[#allocation5 + $0xa0] sm:$0xff] %v59
    %92 = vst [vmem:[#allocation5 + $0xa8] sm:$0xff] %v60
    %93 = vst [vmem:[#allocation5 + $0xb0] sm:$0xff] %v61
    %94 = vst [vmem:[#allocation5 + $0xb8] sm:$0xff] %v62
    %95 = vst [vmem:[#allocation5 + $0xc0] sm:$0xff] %v63
    %96 = vst [vmem:[#allocation5 + $0xc8] sm:$0xff] %v64
    %97 = vst [vmem:[#allocation5 + $0xd0] sm:$0xff] %v65
    %98 = vst [vmem:[#allocation5 + $0xd8] sm:$0xff] %v66
    %99 = vst [vmem:[#allocation5 + $0xe0] sm:$0xff] %v67
    %100 = vst [vmem:[#allocation5 + $0xe8] sm:$0xff] %v68
    %101 = vst [vmem:[#allocation5 + $0xf0] sm:$0xff] %v69
    %102 = vst [vmem:[#allocation5 + $0xf8] sm:$0xff] %v70
    %103 = vst [vmem:[#allocation5 + $0x100] sm:$0xff] %v55
    %104 = vst [vmem:[#allocation5 + $0x108] sm:$0xff] %v56
    %105 = vst [vmem:[#allocation5 + $0x110] sm:$0xff] %v57
    %106 = vst [vmem:[#allocation5 + $0x118] sm:$0xff] %v58
    %107 = vst [vmem:[#allocation5 + $0x120] sm:$0xff] %v59
    %108 = vst [vmem:[#allocation5 + $0x128] sm:$0xff] %v60
    %109 = vst [vmem:[#allocation5 + $0x130] sm:$0xff] %v61
    %110 = vst [vmem:[#allocation5 + $0x138] sm:$0xff] %v62
    %111 = vst [vmem:[#allocation5 + $0x140] sm:$0xff] %v63
    %112 = vst [vmem:[#allocation5 + $0x148] sm:$0xff] %v64
    %113 = vst [vmem:[#allocation5 + $0x150] sm:$0xff] %v65
    %114 = vst [vmem:[#allocation5 + $0x158] sm:$0xff] %v66
    %115 = vst [vmem:[#allocation5 + $0x160] sm:$0xff] %v67
    %116 = vst [vmem:[#allocation5 + $0x168] sm:$0xff] %v68
    %117 = vst [vmem:[#allocation5 + $0x170] sm:$0xff] %v69
    %118 = vst [vmem:[#allocation5 + $0x178] sm:$0xff] %v70
    %119 = vst [vmem:[#allocation5 + $0x180] sm:$0xff] %v55
    %120 = vst [vmem:[#allocation5 + $0x188] sm:$0xff] %v56
    %121 = vst [vmem:[#allocation5 + $0x190] sm:$0xff] %v57
    %122 = vst [vmem:[#allocation5 + $0x198] sm:$0xff] %v58
    %123 = vst [vmem:[#allocation5 + $0x1a0] sm:$0xff] %v59
    %124 = vst [vmem:[#allocation5 + $0x1a8] sm:$0xff] %v60
    %125 = vst [vmem:[#allocation5 + $0x1b0] sm:$0xff] %v61
    %126 = vst [vmem:[#allocation5 + $0x1b8] sm:$0xff] %v62
    %127 = vst [vmem:[#allocation5 + $0x1c0] sm:$0xff] %v63
    %128 = vst [vmem:[#allocation5 + $0x1c8] sm:$0xff] %v64
    %129 = vst [vmem:[#allocation5 + $0x1d0] sm:$0xff] %v65
    %130 = vst [vmem:[#allocation5 + $0x1d8] sm:$0xff] %v66
    %131 = vst [vmem:[#allocation5 + $0x1e0] sm:$0xff] %v67
    %132 = vst [vmem:[#allocation5 + $0x1e8] sm:$0xff] %v68
    %133 = vst [vmem:[#allocation5 + $0x1f0] sm:$0xff] %v69
    %134 = vst [vmem:[#allocation5 + $0x1f8] sm:$0xff] %v70
    // Predicated region
    $region10: #{tpu_custom_call.1} parent=1 // pred_check
      _
    $region11: #{tpu_custom_call.1} parent=1 // pred_check_branch
      %136 = sbr.rel (0) target = $region13
    $region12: #{tpu_custom_call.1} parent=1 // pred_region
      %s138 = ssub.s32 8192, 8192
      %139 = vsyncadd [#allocation4], %s138
      %s140 = sshll.u32 [#allocation5], 4
      %s141 = int_to_ptr.vmem [resolvable:$true] %s140
      %146 = dma.vmem_to_hbm [thread:$0]  %s141, 8192, %s1, [#allocation4], 128, 128, 8
    $region13: #{tpu_custom_call.1} parent=1 // pred_fallthru
      _
    // Predicated region
    $region14: #{tpu_custom_call.1} parent=1 // pred_check
      _
    $region15: #{tpu_custom_call.1} parent=1 // pred_check_branch
      %148 = sbr.rel (0) target = $region17
    $region16: #{tpu_custom_call.1} parent=1 // pred_region
      %149 = dma.done [#allocation4], 8192
    $region17: #{tpu_custom_call.1} parent=1 // pred_fallthru
      _
    %150 = vsyncpa [#allocation3], 1
    %151 = vsyncpa [#allocation4], 1

</llo_original>
